<compile_context>
chip_gen: v7x
topology: tpu7x:2x2x1
jax: 0.10.0
libtpu: 0.0.40
codegen_flags: <defaults>
</compile_context>

<pallas_src>
import functools

import jax
import jax.numpy as jnp
from jax import lax
from jax.experimental import pallas as pl
from jax.experimental.pallas import tpu as pltpu

LANES = 128
SUBLANES = 8
CHUNK_ROWS = 128          # rows per inner-loop step -> small live vreg footprint
MAX_TILE_ROWS = 8192      # (8192, 128) f32 = 4 MiB per input block
_SPLIT_MIN_ROWS = 2048    # >= this many rows: force grid >= 2 (v7x dual-TC)
_EPS = 1e-6


def _cdiv(a, b):
    return -(-a // b)


def _round_up(a, b):
    return _cdiv(a, b) * b


def _bce_kernel(gt_ref, pred_ref, out_ref, *, bg_weight, tile_rows, chunk_rows,
                last_valid_rows):
    """Reduce one (tile_rows, 128) block of BCE loss to an (8, 128) partial sum."""
    n_chunks = tile_rows // chunk_rows
    groups = chunk_rows // SUBLANES

    def chunk_loss(c):
        off = c * chunk_rows
        if not isinstance(off, int):
            off = pl.multiple_of(off, chunk_rows)
        gt = gt_ref[pl.ds(off, chunk_rows), :].astype(jnp.float32)
        pr = pred_ref[pl.ds(off, chunk_rows), :].astype(jnp.float32)
        log_p = jnp.log(pr + jnp.float32(_EPS))
        log_q = jnp.log(jnp.float32(1.0 + _EPS) - pr)
        if bg_weight == 1.0:     # compile-time specialization
            return gt * log_p + (jnp.float32(1.0) - gt) * log_q
        return gt * log_p + jnp.float32(bg_weight) * (jnp.float32(1.0) - gt) * log_q

    def reduce_chunk(loss):
        # (chunk_rows, 128) -> (8, 128): vreg-wise VPU adds (reshape splits the
        # sublane-major dim exactly on (8, 128) tile boundaries).
        return jnp.sum(loss.reshape(groups, SUBLANES, LANES), axis=0)

    def full_chunk(c, acc):
        return acc + reduce_chunk(chunk_loss(c))

    acc0 = jnp.zeros((SUBLANES, LANES), jnp.float32)

    if last_valid_rows == tile_rows:
        # Every block is full: single unmasked path for all grid steps.
        out_ref[...] = lax.fori_loop(0, n_chunks, full_chunk, acc0)
        return

    i = pl.program_id(0)
    last = pl.num_programs(0) - 1

    @pl.when(i != last)
    def _():
        out_ref[...] = lax.fori_loop(0, n_chunks, full_chunk, acc0)

    @pl.when(i == last)
    def _():
        # last_valid_rows is a Python constant -> fully static specialization.
        nfull = last_valid_rows // chunk_rows
        rem = last_valid_rows - nfull * chunk_rows
        acc = lax.fori_loop(0, nfull, full_chunk, acc0) if nfull else acc0
        if rem:
            loss = chunk_loss(nfull)
            row = lax.broadcasted_iota(jnp.int32, (chunk_rows, LANES), 0)
            # Keep this a select: out-of-bounds rows hold garbage / NaN logs
            # and must be discarded, never multiplied.
            loss = jnp.where(row < rem, loss, jnp.float32(0.0))
            acc = acc + reduce_chunk(loss)
        out_ref[...] = acc


def bce_loss(target, predict, output_key=0, target_key=0, bg_weight=1.0):
    """Pallas equivalent of BCE_Loss.forward(target, predict)."""
    gt = target[target_key]
    pred = predict[output_key]
    assert gt.shape == pred.shape
    bg_weight = float(bg_weight)

    gt_flat = gt.reshape(-1)
    pred_flat = pred.reshape(-1)
    n = gt_flat.shape[0]

    n_main = (n // LANES) * LANES          # lane-aligned prefix handled by kernel
    loss_sum = jnp.float32(0.0)

    if n_main:
        # Free reshape when n is lane-aligned; only non-128-multiple n pays a
        # (tiny-tailed) prefix slice.  No jnp.pad / full-array copy anywhere.
        gt_main = gt_flat if n_main == n else gt_flat[:n_main]
        pred_main = pred_flat if n_main == n else pred_flat[:n_main]
        rows = n_main // LANES
        gt2d = gt_main.reshape(rows, LANES)
        pred2d = pred_main.reshape(rows, LANES)

        if rows <= CHUNK_ROWS:
            tile_rows = _round_up(rows, SUBLANES)
            grid = 1
        else:
            grid = max(1, _cdiv(rows, MAX_TILE_ROWS))
            if grid == 1 and rows >= _SPLIT_MIN_ROWS:
                grid = 2                       # let both v7x TensorCores work
            tile_rows = min(MAX_TILE_ROWS, _round_up(_cdiv(rows, grid), CHUNK_ROWS))
            grid = _cdiv(rows, tile_rows)
        chunk_rows = min(CHUNK_ROWS, tile_rows)
        last_valid_rows = rows - (grid - 1) * tile_rows

        kernel = functools.partial(
            _bce_kernel,
            bg_weight=bg_weight,
            tile_rows=tile_rows,
            chunk_rows=chunk_rows,
            last_valid_rows=last_valid_rows,
        )

        in_bytes = tile_rows * LANES * (gt2d.dtype.itemsize + pred2d.dtype.itemsize)
        vmem_limit = int(min(64 << 20, max(32 << 20, 2 * in_bytes + (4 << 20))))

        partials = pl.pallas_call(
            kernel,
            out_shape=jax.ShapeDtypeStruct((grid * SUBLANES, LANES), jnp.float32),
            grid_spec=pltpu.PrefetchScalarGridSpec(
                num_scalar_prefetch=0,
                grid=(grid,),
                in_specs=[
                    pl.BlockSpec((tile_rows, LANES), lambda i: (i, 0)),
                    pl.BlockSpec((tile_rows, LANES), lambda i: (i, 0)),
                ],
                out_specs=pl.BlockSpec((SUBLANES, LANES), lambda i: (i, 0)),
            ),
            compiler_params=pltpu.CompilerParams(
                dimension_semantics=("parallel",),
                vmem_limit_bytes=vmem_limit,
            ),
        )(gt2d, pred2d)
        loss_sum = loss_sum + jnp.sum(partials)

    if n_main != n:
        # < 128-element tail folded in with plain jnp (one tiny fused pass).
        gt_t = gt_flat[n_main:].astype(jnp.float32)
        pr_t = pred_flat[n_main:].astype(jnp.float32)
        tail = gt_t * jnp.log(pr_t + _EPS) + bg_weight * (1.0 - gt_t) * jnp.log(
            (1.0 + _EPS) - pr_t)
        loss_sum = loss_sum + jnp.sum(tail)

    return -loss_sum / jnp.float32(n)


def _reference(gt, pred, bg_weight=1.0):
    gt = gt.reshape(-1).astype(jnp.float32)
    pred = pred.reshape(-1).astype(jnp.float32)
    loss = gt * jnp.log(pred + 1e-06) + bg_weight * (1.0 - gt) * jnp.log(
        1.0 + 1e-06 - pred)
    return -jnp.mean(loss)


if __name__ == "__main__":
    key = jax.random.PRNGKey(0)
    k1, k2, k3, k4, k5, k6 = jax.random.split(key, 6)

    # Case 1: NCHW-like, lane-aligned (2*4*16*16 = 2048 elements), bg_weight=1.
    shape1 = (2, 4, 16, 16)
    pred1 = jax.nn.sigmoid(jax.random.normal(k1, shape1, dtype=jnp.float32))
    gt1 = (jax.random.uniform(k2, shape1) > 0.5).astype(jnp.float32)
    out1 = bce_loss({0: gt1}, {0: pred1}, bg_weight=1.0)
    out1 = jax.block_until_ready(out1)
    ref1 = _reference(gt1, pred1, bg_weight=1.0)
    assert jnp.allclose(out1, ref1, rtol=1e-4, atol=1e-6), (out1, ref1)

    # Case 2: non-aligned element count (3*5*7*41 = 4305): exercises the
    # in-kernel ragged-row mask AND the plain-jnp tail, with bg_weight != 1.
    shape2 = (3, 5, 7, 41)
    pred2 = jax.nn.sigmoid(jax.random.normal(k3, shape2, dtype=jnp.float32))
    gt2 = (jax.random.uniform(k4, shape2) > 0.5).astype(jnp.float32)
    out2 = bce_loss({0: gt2}, {0: pred2}, bg_weight=0.5)
    out2 = jax.block_until_ready(out2)
    ref2 = _reference(gt2, pred2, bg_weight=0.5)
    assert jnp.allclose(out2, ref2, rtol=1e-4, atol=1e-6), (out2, ref2)

    # Case 3: larger aligned input (2*8*128*128 = 262144): exercises the
    # multi-step grid (2 blocks -> both v7x TCs) and the in-kernel chunk loop.
    shape3 = (2, 8, 128, 128)
    pred3 = jax.nn.sigmoid(jax.random.normal(k5, shape3, dtype=jnp.float32))
    gt3 = (jax.random.uniform(k6, shape3) > 0.5).astype(jnp.float32)
    out3 = bce_loss({0: gt3}, {0: pred3}, bg_weight=2.0)
    out3 = jax.block_until_ready(out3)
    ref3 = _reference(gt3, pred3, bg_weight=2.0)
    assert jnp.allclose(out3, ref3, rtol=1e-4, atol=1e-6), (out3, ref3)

    print("KERNEL_OK")
</pallas_src>

<mosaic_0001>
module attributes {stable_mosaic.version = 11 : i64} {
  func.func @_bce_kernel(%arg0: i32, %arg1: memref<16x128xf32, #tpu.memory_space<vmem>>, %arg2: memref<16x128xf32, #tpu.memory_space<vmem>>, %arg3: memref<8x128xf32, #tpu.memory_space<vmem>>) attributes {dimension_semantics = [#tpu.dimension_semantics<parallel>], iteration_bounds = array<i64: 1>, scalar_prefetch = 0 : i64, scratch_operands = 0 : i64, tpu.core_type = #tpu.core_type<tc>, window_params = [{transform_indices = @transform_0, window_bounds = array<i64: 16, 128>}, {transform_indices = @transform_1, window_bounds = array<i64: 16, 128>}, {transform_indices = @transform_2, window_bounds = array<i64: 8, 128>}]} {
    %cst = arith.constant 0.000000e+00 : f32
    %0 = vector.broadcast %cst : f32 to vector<8x128xf32>
    %c0_i32 = arith.constant 0 : i32
    %c16_i32 = arith.constant 16 : i32
    %1 = arith.muli %c0_i32, %c16_i32 : i32
    %2 = tpu.assume_multiple %1, 16 : i32
    %3 = arith.index_cast %2 : i32 to index
    %c0 = arith.constant 0 : index
    %4 = vector.load %arg1[%3, %c0] : memref<16x128xf32, #tpu.memory_space<vmem>>, vector<16x128xf32>
    %5 = arith.index_cast %2 : i32 to index
    %c0_0 = arith.constant 0 : index
    %6 = vector.load %arg2[%5, %c0_0] : memref<16x128xf32, #tpu.memory_space<vmem>>, vector<16x128xf32>
    %cst_1 = arith.constant 9.99999997E-7 : f32
    %7 = vector.broadcast %cst_1 : f32 to vector<16x128xf32>
    %8 = arith.addf %6, %7 : vector<16x128xf32>
    %9 = math.log %8 : vector<16x128xf32>
    %cst_2 = arith.constant 1.00000095 : f32
    %10 = vector.broadcast %cst_2 : f32 to vector<16x128xf32>
    %11 = arith.subf %10, %6 : vector<16x128xf32>
    %12 = math.log %11 : vector<16x128xf32>
    %13 = arith.mulf %4, %9 : vector<16x128xf32>
    %cst_3 = arith.constant 1.000000e+00 : f32
    %14 = vector.broadcast %cst_3 : f32 to vector<16x128xf32>
    %15 = arith.subf %14, %4 : vector<16x128xf32>
    %16 = arith.mulf %15, %12 : vector<16x128xf32>
    %17 = arith.addf %13, %16 : vector<16x128xf32>
    %18 = vector.shape_cast %17 : vector<16x128xf32> to vector<2x8x128xf32>
    %cst_4 = arith.constant dense<0.000000e+00> : vector<8x128xf32>
    %19 = vector.multi_reduction <add>, %18, %cst_4 [0] : vector<2x8x128xf32> to vector<8x128xf32>
    %20 = arith.addf %0, %19 : vector<8x128xf32>
    %c1_i32 = arith.constant 1 : i32
    %c0_5 = arith.constant 0 : index
    %c0_6 = arith.constant 0 : index
    %21 = vector.load %arg3[%c0_5, %c0_6] : memref<8x128xf32, #tpu.memory_space<vmem>>, vector<8x128xf32>
    tpu.vector_store %arg3[%c0_5, %c0_6], %20 {strides = array<i32>} : memref<8x128xf32, #tpu.memory_space<vmem>>, vector<8x128xf32>,
    return
  }
  func.func @transform_0(%arg0: i32) -> (i32, i32) {
    %c0_i32 = arith.constant 0 : i32
    %c0_i32_0 = arith.constant 0 : i32
    return %arg0, %c0_i32 : i32, i32
  }
  func.func @transform_1(%arg0: i32) -> (i32, i32) {
    %c0_i32 = arith.constant 0 : i32
    %c0_i32_0 = arith.constant 0 : i32
    return %arg0, %c0_i32 : i32, i32
  }
  func.func @transform_2(%arg0: i32) -> (i32, i32) {
    %c0_i32 = arith.constant 0 : i32
    %c0_i32_0 = arith.constant 0 : i32
    return %arg0, %c0_i32 : i32, i32
  }
}

</mosaic_0001>

<llo_original>
// kernel: tpu_custom_call.1
$region0: #{tpu_custom_call.1}
  #allocation0 [shape = 'u32[]', space=smem, size = 0x4, offset = 0x4, fixed_abs, tag = 'smem constant byte address 0x4 - core index']
  #allocation1 [shape = 'u32[144,128]{1,0:T(1,128)}', space=vmem, size = 0x12000, scoped, tag = 'internal scratch']
  %s0 = inlined_call_operand.hbm [shape: f32[16,128], index: 0, kind: input, shape index: {}]
  %s1 = inlined_call_operand.hbm [shape: f32[16,128], index: 1, kind: input, shape index: {}]
  %s2 = inlined_call_operand.hbm [shape: f32[8,128], index: 2, kind: output, shape index: {}]
  %s3 = sld [smem:[#allocation0]]
  $region26: #{tpu_custom_call.1} parent=0
    _
  %s5 = ssub.s32 1, %s3
  %s6 = scalar_select 0, %s5, %s3
  $region1: #{tpu_custom_call.1} parent=0
    #allocation2 [shape = 'u8[8192]{0}', space=vmem, size = 0x2000, scoped, tag = 'input window, operand 0, single buffered']
    #allocation3 [shape = 's32[1]{0}', space=sflag, size = 0x4, scoped, tag = 'scoped memory for tpu_custom_call.1']
    #allocation4 [shape = 's32[1]{0}', space=sflag, size = 0x4, scoped, tag = 'scoped memory for tpu_custom_call.1']
    #allocation5 [shape = 'u8[8192]{0}', space=vmem, size = 0x2000, scoped, tag = 'input window, operand 1, single buffered']
    #allocation6 [shape = 's32[1]{0}', space=sflag, size = 0x4, scoped, tag = 'scoped memory for tpu_custom_call.1']
    #allocation7 [shape = 'u8[4096]{0}', space=vmem, size = 0x1000, scoped, tag = 'output window, operand 0, single buffered']
    %7 = vsyncpa [#allocation3], 0
    %8 = vsyncpa [#allocation6], 0
    %9 = vsyncpa [#allocation4], 0
    // Predicated region
    $region2: #{tpu_custom_call.1} parent=1 // pred_check
      _
    $region3: #{tpu_custom_call.1} parent=1 // pred_check_branch
      %11 = sbr.rel (0) target = $region5
    $region4: #{tpu_custom_call.1} parent=1 // pred_region
      %s13 = ssub.s32 256, 256
      %14 = vsyncadd [#allocation3], %s13
      %s15 = sshll.u32 [#allocation2], 4
      %s16 = int_to_ptr.vmem [resolvable:$true] %s15
      %21 = dma.hbm_to_vmem [thread:$0]  %s0, 256, %s16, [#allocation3], 128, 128, 8
    $region5: #{tpu_custom_call.1} parent=1 // pred_fallthru
      _
    // Predicated region
    $region6: #{tpu_custom_call.1} parent=1 // pred_check
      _
    $region7: #{tpu_custom_call.1} parent=1 // pred_check_branch
      %23 = sbr.rel (0) target = $region9
    $region8: #{tpu_custom_call.1} parent=1 // pred_region
      %s25 = ssub.s32 256, 256
      %26 = vsyncadd [#allocation6], %s25
      %s27 = sshll.u32 [#allocation5], 4
      %s28 = int_to_ptr.vmem [resolvable:$true] %s27
      %33 = dma.hbm_to_vmem [thread:$0]  %s1, 256, %s28, [#allocation6], 128, 128, 8
    $region9: #{tpu_custom_call.1} parent=1 // pred_fallthru
      _
    // Predicated region
    $region10: #{tpu_custom_call.1} parent=1 // pred_check
      _
    $region11: #{tpu_custom_call.1} parent=1 // pred_check_branch
      %35 = sbr.rel (0) target = $region13
    $region12: #{tpu_custom_call.1} parent=1 // pred_region
      %36 = dma.done [#allocation3], 256
    $region13: #{tpu_custom_call.1} parent=1 // pred_fallthru
      _
    // Predicated region
    $region14: #{tpu_custom_call.1} parent=1 // pred_check
      _
    $region15: #{tpu_custom_call.1} parent=1 // pred_check_branch
      %38 = sbr.rel (0) target = $region17
    $region16: #{tpu_custom_call.1} parent=1 // pred_region
      %39 = dma.done [#allocation6], 256
    $region17: #{tpu_custom_call.1} parent=1 // pred_fallthru
      _
    %v40 = vld [vmem:[#allocation2] sm:$0xff]
    %v41 = vld [vmem:[#allocation2 + $0x8] sm:$0xff]
    %v42 = vld [vmem:[#allocation5] sm:$0xff]
    %v43 = vld [vmem:[#allocation5 + $0x8] sm:$0xff]
    %v44 = vadd.f32 %v42, 1e-06
    %v45 = vadd.f32 %v43, 1e-06
    %v46 = vlog2.pop %v44
    %v47 = vmul.f32 %v46, 0.6931472
    %v48 = vlog2.pop %v45
    %v49 = vmul.f32 %v48, 0.6931472
    %v50 = vsub.f32 1.000001, %v42
    %v51 = vsub.f32 1.000001, %v43
    %v52 = vlog2.pop %v50
    %v53 = vmul.f32 %v52, 0.6931472
    %v54 = vlog2.pop %v51
    %v55 = vmul.f32 %v54, 0.6931472
    %v56 = vmul.f32 %v40, %v47
    %v57 = vmul.f32 %v41, %v49
    %v58 = vsub.f32 1.0, %v40
    %v59 = vsub.f32 1.0, %v41
    %v60 = vmul.f32 %v58, %v53
    %v61 = vmul.f32 %v59, %v55
    %v62 = vadd.f32 %v56, %v60
    %v63 = vadd.f32 %v57, %v61
    %v64 = vadd.f32 %v62, %v63
    %v65 = vadd.f32 %v64, 0.0
    %66 = vst [vmem:[#allocation7] sm:$0xff] %v65
    // Predicated region
    $region18: #{tpu_custom_call.1} parent=1 // pred_check
      _
    $region19: #{tpu_custom_call.1} parent=1 // pred_check_branch
      %68 = sbr.rel (0) target = $region21
    $region20: #{tpu_custom_call.1} parent=1 // pred_region
      %s70 = ssub.s32 128, 128
      %71 = vsyncadd [#allocation4], %s70
      %s73 = sshll.u32 [#allocation7], 4
      %s74 = int_to_ptr.vmem [resolvable:$true] %s73
      %76 = dma.vmem_to_hbm [thread:$0]  %s74, 128, %s2, [#allocation4]
    $region21: #{tpu_custom_call.1} parent=1 // pred_fallthru
      _
    // Predicated region
    $region22: #{tpu_custom_call.1} parent=1 // pred_check
      _
    $region23: #{tpu_custom_call.1} parent=1 // pred_check_branch
      %78 = sbr.rel (0) target = $region25
    $region24: #{tpu_custom_call.1} parent=1 // pred_region
      %79 = dma.done [#allocation4], 128
    $region25: #{tpu_custom_call.1} parent=1 // pred_fallthru
      _
    %80 = vsyncpa [#allocation3], 1
    %81 = vsyncpa [#allocation6], 1
    %82 = vsyncpa [#allocation4], 1

</llo_original>
